<compile_context>
chip_gen: v7x
topology: tpu7x:2x2x1
jax: 0.10.0
libtpu: 0.0.40
codegen_flags: <defaults>
</compile_context>

<pallas_src>
import math

import jax
import jax.numpy as jnp
from jax.experimental import pallas as pl
from jax.experimental.pallas import tpu as pltpu

INPUT_SIZE = 4       # LENGTH
HIDDEN_SIZE = 300    # hidden_size
NUM_CLASSES = 4      # LENGTH

# Hardware-friendly padded sizes (lane dims must be multiples of 128).
HIDDEN_PAD = 384     # 3 * 128  (300 zero-padded)
OUT_PAD = 128        # 4 zero-padded -> lane-dense output stores


def net_kernel(x_ref, w1_ref, b1_ref, w23_ref, b23_ref, o_ref):
    """Fused MLP forward: (VPU fc1 + ReLU) -> (MXU folded fc2@fc3) -> sigmoid."""
    x = x_ref[...]                                         # (batch, 4)

    # fc1 on the VPU: K = 4 unrolled broadcast-FMAs (MXU would waste >96% of K).
    h1 = jnp.zeros((x.shape[0], HIDDEN_PAD), jnp.float32)
    for k in range(INPUT_SIZE):                            # static unroll
        h1 = h1 + x[:, k:k + 1] * w1_ref[k:k + 1, :]       # (B,1)*(1,384)
    h1 = jnp.maximum(h1 + b1_ref[...], 0.0)                # bias + ReLU
    # Padded hidden columns are exactly 0 (zero weights, zero bias, relu(0)=0),
    # and the matching rows of w23 are zero, so they contribute nothing below.

    # Folded fc2 @ fc3: single (B, 384) @ (384, 128) MXU matmul.
    h3 = jnp.dot(h1, w23_ref[...], preferred_element_type=jnp.float32) + b23_ref[...]

    # sigmoid(s) = 1 / (1 + exp(-s)) via EUP exp + reciprocal.
    o_ref[...] = pl.reciprocal(1.0 + jnp.exp(-h3))


def net_forward(x, folded_params):
    w1p, b1p, w23p, b23p = folded_params
    batch = x.shape[0]
    vmem = pl.BlockSpec(memory_space=pltpu.MemorySpace.VMEM)
    out = pl.pallas_call(
        net_kernel,
        out_shape=jax.ShapeDtypeStruct((batch, OUT_PAD), jnp.float32),
        in_specs=[vmem] * 5,
        out_specs=vmem,
    )(x, w1p, b1p, w23p, b23p)
    return out[:, :NUM_CLASSES]


def init_linear(key, fan_in, fan_out):
    """Matches PyTorch nn.Linear default init: U(-1/sqrt(fan_in), 1/sqrt(fan_in)).
    Weights are stored (in, out) so the math is y = x @ W + b."""
    kw, kb = jax.random.split(key)
    bound = 1.0 / math.sqrt(fan_in)
    w = jax.random.uniform(kw, (fan_in, fan_out), jnp.float32, -bound, bound)
    b = jax.random.uniform(kb, (1, fan_out), jnp.float32, -bound, bound)
    return w, b


def init_params(key):
    k1, k2, k3 = jax.random.split(key, 3)
    w1, b1 = init_linear(k1, INPUT_SIZE, HIDDEN_SIZE)
    w2, b2 = init_linear(k2, HIDDEN_SIZE, HIDDEN_SIZE)
    w3, b3 = init_linear(k3, HIDDEN_SIZE, NUM_CLASSES)
    return (w1, b1, w2, b2, w3, b3)


def fold_and_pad_params(params):
    """One-time host/XLA-side prep: fold fc2@fc3 and zero-pad to TPU-friendly
    shapes. Runs once outside the kernel."""
    w1, b1, w2, b2, w3, b3 = params
    w23 = w2 @ w3                    # (300, 4)
    b23 = b2 @ w3 + b3               # (1, 4)

    w1p = jnp.zeros((INPUT_SIZE, HIDDEN_PAD), jnp.float32).at[:, :HIDDEN_SIZE].set(w1)
    b1p = jnp.zeros((1, HIDDEN_PAD), jnp.float32).at[:, :HIDDEN_SIZE].set(b1)
    w23p = jnp.zeros((HIDDEN_PAD, OUT_PAD), jnp.float32).at[:HIDDEN_SIZE, :NUM_CLASSES].set(w23)
    b23p = jnp.zeros((1, OUT_PAD), jnp.float32).at[:, :NUM_CLASSES].set(b23)
    return (w1p, b1p, w23p, b23p)


def net_reference(x, params):
    """Pure-JAX reference with the ORIGINAL (unfolded) computation order."""
    w1, b1, w2, b2, w3, b3 = params
    h1 = jnp.maximum(x @ w1 + b1, 0.0)
    h2 = h1 @ w2 + b2
    h3 = h2 @ w3 + b3
    return 1.0 / (1.0 + jnp.exp(-h3))


if __name__ == "__main__":
    key = jax.random.PRNGKey(0)
    k_params, k_x = jax.random.split(key)

    params = init_params(k_params)
    folded = fold_and_pad_params(params)

    batch = 8
    x = jax.random.normal(k_x, (batch, INPUT_SIZE), jnp.float32)

    out = net_forward(x, folded)
    out = jax.block_until_ready(out)

    ref = net_reference(x, params)
    assert out.shape == (batch, NUM_CLASSES), out.shape
    # Tolerance covers fp32 re-association from the fc2@fc3 fold.
    assert jnp.allclose(out, ref, atol=1e-4, rtol=1e-4), "mismatch vs reference"

    print("KERNEL_OK")
</pallas_src>

<mosaic_0001>
module attributes {stable_mosaic.version = 11 : i64} {
  func.func @net_kernel(%arg0: memref<8x4xf32, #tpu.memory_space<vmem>>, %arg1: memref<4x384xf32, #tpu.memory_space<vmem>>, %arg2: memref<1x384xf32, #tpu.memory_space<vmem>>, %arg3: memref<384x128xf32, #tpu.memory_space<vmem>>, %arg4: memref<1x128xf32, #tpu.memory_space<vmem>>, %arg5: memref<8x128xf32, #tpu.memory_space<vmem>>) attributes {dimension_semantics = [], scalar_prefetch = 0 : i64, scratch_operands = 0 : i64, tpu.core_type = #tpu.core_type<tc>} {
    %c0 = arith.constant 0 : index
    %c0_0 = arith.constant 0 : index
    %0 = vector.load %arg0[%c0, %c0_0] : memref<8x4xf32, #tpu.memory_space<vmem>>, vector<8x4xf32>
    %cst = arith.constant 0.000000e+00 : f32
    %1 = vector.broadcast %cst : f32 to vector<8x384xf32>
    %2 = vector.extract_strided_slice %0 {offsets = [0, 0], sizes = [8, 1], strides = [1, 1]} : vector<8x4xf32> to vector<8x1xf32>
    %c0_1 = arith.constant 0 : index
    %c0_2 = arith.constant 0 : index
    %3 = vector.load %arg1[%c0_1, %c0_2] : memref<4x384xf32, #tpu.memory_space<vmem>>, vector<1x384xf32>
    %4 = vector.broadcast %2 : vector<8x1xf32> to vector<8x384xf32>
    %5 = vector.broadcast %3 : vector<1x384xf32> to vector<8x384xf32>
    %6 = arith.mulf %4, %5 : vector<8x384xf32>
    %7 = arith.addf %1, %6 : vector<8x384xf32>
    %8 = vector.extract_strided_slice %0 {offsets = [0, 1], sizes = [8, 1], strides = [1, 1]} : vector<8x4xf32> to vector<8x1xf32>
    %c1 = arith.constant 1 : index
    %c0_3 = arith.constant 0 : index
    %9 = vector.load %arg1[%c1, %c0_3] : memref<4x384xf32, #tpu.memory_space<vmem>>, vector<1x384xf32>
    %10 = vector.broadcast %8 : vector<8x1xf32> to vector<8x384xf32>
    %11 = vector.broadcast %9 : vector<1x384xf32> to vector<8x384xf32>
    %12 = arith.mulf %10, %11 : vector<8x384xf32>
    %13 = arith.addf %7, %12 : vector<8x384xf32>
    %14 = vector.extract_strided_slice %0 {offsets = [0, 2], sizes = [8, 1], strides = [1, 1]} : vector<8x4xf32> to vector<8x1xf32>
    %c2 = arith.constant 2 : index
    %c0_4 = arith.constant 0 : index
    %15 = vector.load %arg1[%c2, %c0_4] : memref<4x384xf32, #tpu.memory_space<vmem>>, vector<1x384xf32>
    %16 = vector.broadcast %14 : vector<8x1xf32> to vector<8x384xf32>
    %17 = vector.broadcast %15 : vector<1x384xf32> to vector<8x384xf32>
    %18 = arith.mulf %16, %17 : vector<8x384xf32>
    %19 = arith.addf %13, %18 : vector<8x384xf32>
    %20 = vector.extract_strided_slice %0 {offsets = [0, 3], sizes = [8, 1], strides = [1, 1]} : vector<8x4xf32> to vector<8x1xf32>
    %c3 = arith.constant 3 : index
    %c0_5 = arith.constant 0 : index
    %21 = vector.load %arg1[%c3, %c0_5] : memref<4x384xf32, #tpu.memory_space<vmem>>, vector<1x384xf32>
    %22 = vector.broadcast %20 : vector<8x1xf32> to vector<8x384xf32>
    %23 = vector.broadcast %21 : vector<1x384xf32> to vector<8x384xf32>
    %24 = arith.mulf %22, %23 : vector<8x384xf32>
    %25 = arith.addf %19, %24 : vector<8x384xf32>
    %c0_6 = arith.constant 0 : index
    %c0_7 = arith.constant 0 : index
    %26 = vector.load %arg2[%c0_6, %c0_7] : memref<1x384xf32, #tpu.memory_space<vmem>>, vector<1x384xf32>
    %27 = vector.broadcast %26 : vector<1x384xf32> to vector<8x384xf32>
    %28 = arith.addf %25, %27 : vector<8x384xf32>
    %cst_8 = arith.constant 0.000000e+00 : f32
    %29 = vector.broadcast %cst_8 : f32 to vector<8x384xf32>
    %30 = arith.maximumf %28, %29 : vector<8x384xf32>
    %c0_9 = arith.constant 0 : index
    %c0_10 = arith.constant 0 : index
    %31 = vector.load %arg3[%c0_9, %c0_10] : memref<384x128xf32, #tpu.memory_space<vmem>>, vector<384x128xf32>
    %cst_11 = arith.constant dense<0.000000e+00> : vector<8x128xf32>
    %32 = tpu.matmul %30, %31, %cst_11 {dimension_numbers = #tpu.dot_dimension_numbers<[1], [0], [0], [1], [0, 0, 1, 1], [], []>} : vector<8x384xf32>, vector<384x128xf32>, vector<8x128xf32> -> vector<8x128xf32>
    %c0_12 = arith.constant 0 : index
    %c0_13 = arith.constant 0 : index
    %33 = vector.load %arg4[%c0_12, %c0_13] : memref<1x128xf32, #tpu.memory_space<vmem>>, vector<1x128xf32>
    %34 = vector.broadcast %33 : vector<1x128xf32> to vector<8x128xf32>
    %35 = arith.addf %32, %34 : vector<8x128xf32>
    %cst_14 = arith.constant 0.000000e+00 : f32
    %36 = vector.broadcast %cst_14 : f32 to vector<8x128xf32>
    %37 = arith.subf %36, %35 : vector<8x128xf32>
    %38 = math.exp %37 : vector<8x128xf32>
    %cst_15 = arith.constant 1.000000e+00 : f32
    %39 = vector.broadcast %cst_15 : f32 to vector<8x128xf32>
    %40 = arith.addf %39, %38 : vector<8x128xf32>
    %41 = tpu.reciprocal %40 : vector<8x128xf32> -> vector<8x128xf32>
    %c0_16 = arith.constant 0 : index
    %c0_17 = arith.constant 0 : index
    %42 = vector.load %arg5[%c0_16, %c0_17] : memref<8x128xf32, #tpu.memory_space<vmem>>, vector<8x128xf32>
    tpu.vector_store %arg5[%c0_16, %c0_17], %41 {strides = array<i32>} : memref<8x128xf32, #tpu.memory_space<vmem>>, vector<8x128xf32>,
    return
  }
}

</mosaic_0001>

<llo_original>
// kernel: tpu_custom_call.1
$region0: #{tpu_custom_call.1}
  #allocation0 [shape = 'u32[]', space=smem, size = 0x4, offset = 0x4, fixed_abs, tag = 'smem constant byte address 0x4 - core index']
  #allocation1 [shape = 'u32[144,128]{1,0:T(1,128)}', space=vmem, size = 0x12000, scoped, tag = 'internal scratch']
  %s0 = inlined_call_operand.vmem [shape: f32[8,4], index: 0, kind: input, shape index: {}]
  %s1 = inlined_call_operand.vmem [shape: f32[4,384], index: 1, kind: input, shape index: {}]
  %s2 = inlined_call_operand.vmem [shape: f32[1,384], index: 2, kind: input, shape index: {}]
  %s3 = inlined_call_operand.hbm [shape: f32[384,128], index: 3, kind: input, shape index: {}]
  %s4 = inlined_call_operand.vmem [shape: f32[1,128], index: 4, kind: input, shape index: {}]
  %s5 = inlined_call_operand.hbm [shape: f32[8,128], index: 5, kind: output, shape index: {}]
  %s6 = sld [smem:[#allocation0]]
  $region34: #{tpu_custom_call.1} parent=0
    _
  %s8 = ssub.s32 1, %s6
  %s9 = scalar_select 0, %s8, %s6
  $region1: #{tpu_custom_call.1} parent=0
    #allocation2 [shape = 'u8[196608]{0}', space=vmem, size = 0x30000, scoped, tag = 'input window, operand 3, single buffered']
    #allocation3 [shape = 's32[1]{0}', space=sflag, size = 0x4, scoped, tag = 'scoped memory for tpu_custom_call.1']
    #allocation4 [shape = 's32[1]{0}', space=sflag, size = 0x4, scoped, tag = 'scoped memory for tpu_custom_call.1']
    #allocation5 [shape = 'u8[4096]{0}', space=vmem, size = 0x1000, scoped, tag = 'output window, operand 0, single buffered']
    %10 = vsyncpa [#allocation3], 0
    %11 = vsyncpa [#allocation4], 0
    // Predicated region
    $region2: #{tpu_custom_call.1} parent=1 // pred_check
      _
    $region3: #{tpu_custom_call.1} parent=1 // pred_check_branch
      %13 = sbr.rel (0) target = $region5
    $region4: #{tpu_custom_call.1} parent=1 // pred_region
      _
    $region5: #{tpu_custom_call.1} parent=1 // pred_fallthru
      _
    // Predicated region
    $region6: #{tpu_custom_call.1} parent=1 // pred_check
      _
    $region7: #{tpu_custom_call.1} parent=1 // pred_check_branch
      %15 = sbr.rel (0) target = $region9
    $region8: #{tpu_custom_call.1} parent=1 // pred_region
      _
    $region9: #{tpu_custom_call.1} parent=1 // pred_fallthru
      _
    // Predicated region
    $region10: #{tpu_custom_call.1} parent=1 // pred_check
      _
    $region11: #{tpu_custom_call.1} parent=1 // pred_check_branch
      %17 = sbr.rel (0) target = $region13
    $region12: #{tpu_custom_call.1} parent=1 // pred_region
      _
    $region13: #{tpu_custom_call.1} parent=1 // pred_fallthru
      _
    // Predicated region
    $region14: #{tpu_custom_call.1} parent=1 // pred_check
      _
    $region15: #{tpu_custom_call.1} parent=1 // pred_check_branch
      %19 = sbr.rel (0) target = $region17
    $region16: #{tpu_custom_call.1} parent=1 // pred_region
      %s21 = ssub.s32 6144, 6144
      %22 = vsyncadd [#allocation3], %s21
      %s23 = sshll.u32 [#allocation2], 4
      %s24 = int_to_ptr.vmem [resolvable:$true] %s23
      %29 = dma.hbm_to_vmem [thread:$0]  %s3, 6144, %s24, [#allocation3], 128, 128, 8
    $region17: #{tpu_custom_call.1} parent=1 // pred_fallthru
      _
    // Predicated region
    $region18: #{tpu_custom_call.1} parent=1 // pred_check
      _
    $region19: #{tpu_custom_call.1} parent=1 // pred_check_branch
      %31 = sbr.rel (0) target = $region21
    $region20: #{tpu_custom_call.1} parent=1 // pred_region
      _
    $region21: #{tpu_custom_call.1} parent=1 // pred_fallthru
      _
    // Predicated region
    $region22: #{tpu_custom_call.1} parent=1 // pred_check
      _
    $region23: #{tpu_custom_call.1} parent=1 // pred_check_branch
      %33 = sbr.rel (0) target = $region25
    $region24: #{tpu_custom_call.1} parent=1 // pred_region
      %34 = dma.done [#allocation3], 6144
    $region25: #{tpu_custom_call.1} parent=1 // pred_fallthru
      _
    %v35 = vld [vmem:[%s0] sm:$0xff]
    %v36 = vld [vmem:[%s1] ss:$4 sm:$0x7]
    %38 = vset.pattern.permute.xlu0 0
    %39 = vperm.xlu0 %38, %v35
    %v40 = vpop.permute.xlu0 %39
    %v43 = vlaneseq
    %v44 = vshrl.u32 %v43, 7
    %v45 = vsub.s32 0, %v44
    %v46 = vrot.slane %v36, %v45
    %v47 = vlaneseq
    %v48 = vshrl.u32 %v47, 7
    %v49 = vsub.s32 1, %v48
    %v50 = vrot.slane %v36, %v49
    %v51 = vlaneseq
    %v52 = vshrl.u32 %v51, 7
    %v53 = vsub.s32 2, %v52
    %v54 = vrot.slane %v36, %v53
    %v58 = vmul.f32 %v40, %v46
    %v59 = vmul.f32 %v40, %v50
    %v60 = vmul.f32 %v40, %v54
    %v61 = vadd.f32 %v58, 0.0
    %v62 = vadd.f32 %v59, 0.0
    %v63 = vadd.f32 %v60, 0.0
    %s64 = scalar_lea.vmem %s1, 1
    %v65 = vld [vmem:[%s64] ss:$4 sm:$0x7]
    %66 = vset.pattern.permute.xlu0 1
    %67 = vperm.xlu0 %66, %v35
    %v68 = vpop.permute.xlu0 %67
    %v71 = vlaneseq
    %v72 = vshrl.u32 %v71, 7
    %v73 = vsub.s32 0, %v72
    %v74 = vrot.slane %v65, %v73
    %v75 = vlaneseq
    %v76 = vshrl.u32 %v75, 7
    %v77 = vsub.s32 1, %v76
    %v78 = vrot.slane %v65, %v77
    %v79 = vlaneseq
    %v80 = vshrl.u32 %v79, 7
    %v81 = vsub.s32 2, %v80
    %v82 = vrot.slane %v65, %v81
    %v86 = vmul.f32 %v68, %v74
    %v87 = vmul.f32 %v68, %v78
    %v88 = vmul.f32 %v68, %v82
    %v89 = vadd.f32 %v61, %v86
    %v90 = vadd.f32 %v62, %v87
    %v91 = vadd.f32 %v63, %v88
    %s92 = scalar_lea.vmem %s1, 2
    %v93 = vld [vmem:[%s92] ss:$4 sm:$0x7]
    %94 = vset.pattern.permute.xlu0 2
    %95 = vperm.xlu0 %94, %v35
    %v96 = vpop.permute.xlu0 %95
    %v99 = vlaneseq
    %v100 = vshrl.u32 %v99, 7
    %v101 = vsub.s32 0, %v100
    %v102 = vrot.slane %v93, %v101
    %v103 = vlaneseq
    %v104 = vshrl.u32 %v103, 7
    %v105 = vsub.s32 1, %v104
    %v106 = vrot.slane %v93, %v105
    %v107 = vlaneseq
    %v108 = vshrl.u32 %v107, 7
    %v109 = vsub.s32 2, %v108
    %v110 = vrot.slane %v93, %v109
    %v114 = vmul.f32 %v96, %v102
    %v115 = vmul.f32 %v96, %v106
    %v116 = vmul.f32 %v96, %v110
    %v117 = vadd.f32 %v89, %v114
    %v118 = vadd.f32 %v90, %v115
    %v119 = vadd.f32 %v91, %v116
    %s120 = scalar_lea.vmem %s1, 3
    %v121 = vld [vmem:[%s120] ss:$4 sm:$0x7]
    %122 = vset.pattern.permute.xlu0 3
    %123 = vperm.xlu0 %122, %v35
    %v124 = vpop.permute.xlu0 %123
    %v127 = vlaneseq
    %v128 = vshrl.u32 %v127, 7
    %v129 = vsub.s32 0, %v128
    %v130 = vrot.slane %v121, %v129
    %v131 = vlaneseq
    %v132 = vshrl.u32 %v131, 7
    %v133 = vsub.s32 1, %v132
    %v134 = vrot.slane %v121, %v133
    %v135 = vlaneseq
    %v136 = vshrl.u32 %v135, 7
    %v137 = vsub.s32 2, %v136
    %v138 = vrot.slane %v121, %v137
    %v142 = vmul.f32 %v124, %v130
    %v143 = vmul.f32 %v124, %v134
    %v144 = vmul.f32 %v124, %v138
    %v145 = vadd.f32 %v117, %v142
    %v146 = vadd.f32 %v118, %v143
    %v147 = vadd.f32 %v119, %v144
    %v148 = vld [vmem:[%s2] sm:$0x7]
    %v150 = vlaneseq
    %v151 = vshrl.u32 %v150, 7
    %v152 = vsub.s32 0, %v151
    %v153 = vrot.slane %v148, %v152
    %v154 = vlaneseq
    %v155 = vshrl.u32 %v154, 7
    %v156 = vsub.s32 1, %v155
    %v157 = vrot.slane %v148, %v156
    %v158 = vlaneseq
    %v159 = vshrl.u32 %v158, 7
    %v160 = vsub.s32 2, %v159
    %v161 = vrot.slane %v148, %v160
    %v165 = vadd.f32 %v145, %v153
    %v166 = vadd.f32 %v146, %v157
    %v167 = vadd.f32 %v147, %v161
    %v168 = vmax.f32 %v165, 0.0
    %v169 = vmax.f32 %v166, 0.0
    %v170 = vmax.f32 %v167, 0.0
    %v171 = vld [vmem:[#allocation2] sm:$0xff]
    %v172 = vld [vmem:[#allocation2 + $0x8] sm:$0xff]
    %v173 = vld [vmem:[#allocation2 + $0x10] sm:$0xff]
    %v174 = vld [vmem:[#allocation2 + $0x18] sm:$0xff]
    %v175 = vld [vmem:[#allocation2 + $0x20] sm:$0xff]
    %v176 = vld [vmem:[#allocation2 + $0x28] sm:$0xff]
    %v177 = vld [vmem:[#allocation2 + $0x30] sm:$0xff]
    %v178 = vld [vmem:[#allocation2 + $0x38] sm:$0xff]
    %v179 = vld [vmem:[#allocation2 + $0x40] sm:$0xff]
    %v180 = vld [vmem:[#allocation2 + $0x48] sm:$0xff]
    %v181 = vld [vmem:[#allocation2 + $0x50] sm:$0xff]
    %v182 = vld [vmem:[#allocation2 + $0x58] sm:$0xff]
    %v183 = vld [vmem:[#allocation2 + $0x60] sm:$0xff]
    %v184 = vld [vmem:[#allocation2 + $0x68] sm:$0xff]
    %v185 = vld [vmem:[#allocation2 + $0x70] sm:$0xff]
    %v186 = vld [vmem:[#allocation2 + $0x78] sm:$0xff]
    %v187 = vld [vmem:[#allocation2 + $0x80] sm:$0xff]
    %v188 = vld [vmem:[#allocation2 + $0x88] sm:$0xff]
    %v189 = vld [vmem:[#allocation2 + $0x90] sm:$0xff]
    %v190 = vld [vmem:[#allocation2 + $0x98] sm:$0xff]
    %v191 = vld [vmem:[#allocation2 + $0xa0] sm:$0xff]
    %v192 = vld [vmem:[#allocation2 + $0xa8] sm:$0xff]
    %v193 = vld [vmem:[#allocation2 + $0xb0] sm:$0xff]
    %v194 = vld [vmem:[#allocation2 + $0xb8] sm:$0xff]
    %v195 = vld [vmem:[#allocation2 + $0xc0] sm:$0xff]
    %v196 = vld [vmem:[#allocation2 + $0xc8] sm:$0xff]
    %v197 = vld [vmem:[#allocation2 + $0xd0] sm:$0xff]
    %v198 = vld [vmem:[#allocation2 + $0xd8] sm:$0xff]
    %v199 = vld [vmem:[#allocation2 + $0xe0] sm:$0xff]
    %v200 = vld [vmem:[#allocation2 + $0xe8] sm:$0xff]
    %v201 = vld [vmem:[#allocation2 + $0xf0] sm:$0xff]
    %v202 = vld [vmem:[#allocation2 + $0xf8] sm:$0xff]
    %v203 = vld [vmem:[#allocation2 + $0x100] sm:$0xff]
    %v204 = vld [vmem:[#allocation2 + $0x108] sm:$0xff]
    %v205 = vld [vmem:[#allocation2 + $0x110] sm:$0xff]
    %v206 = vld [vmem:[#allocation2 + $0x118] sm:$0xff]
    %v207 = vld [vmem:[#allocation2 + $0x120] sm:$0xff]
    %v208 = vld [vmem:[#allocation2 + $0x128] sm:$0xff]
    %v209 = vld [vmem:[#allocation2 + $0x130] sm:$0xff]
    %v210 = vld [vmem:[#allocation2 + $0x138] sm:$0xff]
    %v211 = vld [vmem:[#allocation2 + $0x140] sm:$0xff]
    %v212 = vld [vmem:[#allocation2 + $0x148] sm:$0xff]
    %v213 = vld [vmem:[#allocation2 + $0x150] sm:$0xff]
    %v214 = vld [vmem:[#allocation2 + $0x158] sm:$0xff]
    %v215 = vld [vmem:[#allocation2 + $0x160] sm:$0xff]
    %v216 = vld [vmem:[#allocation2 + $0x168] sm:$0xff]
    %v217 = vld [vmem:[#allocation2 + $0x170] sm:$0xff]
    %v218 = vld [vmem:[#allocation2 + $0x178] sm:$0xff]
    %v219 = vld [vmem:[%s4] sm:$0x1]
    %v221 = vlaneseq
    %v222 = vshrl.u32 %v221, 7
    %v223 = vsub.s32 0, %v222
    %v224 = vrot.slane %v219, %v223
    %226 = vmatprep.subr.mxu0 0.0
    %227 = vmatpush1.msra.mxu0 %v171
    %228 = vmatprep.subr.mxu0 0.0
    %229 = vmatpush1.msra.mxu0 %v172
    %230 = vmatprep.subr.mxu0 0.0
    %231 = vmatpush1.msra.mxu0 %v173
    %232 = vmatprep.subr.mxu0 0.0
    %233 = vmatpush1.msra.mxu0 %v174
    %234 = vmatprep.subr.mxu0 0.0
    %235 = vmatpush1.msra.mxu0 %v175
    %236 = vmatprep.subr.mxu0 0.0
    %237 = vmatpush1.msra.mxu0 %v176
    %238 = vmatprep.subr.mxu0 0.0
    %239 = vmatpush1.msra.mxu0 %v177
    %240 = vmatprep.subr.mxu0 0.0
    %241 = vmatpush1.msra.mxu0 %v178
    %242 = vmatprep.subr.mxu0 0.0
    %243 = vmatpush1.msra.mxu0 %v179
    %244 = vmatprep.subr.mxu0 0.0
    %245 = vmatpush1.msra.mxu0 %v180
    %246 = vmatprep.subr.mxu0 0.0
    %247 = vmatpush1.msra.mxu0 %v181
    %248 = vmatprep.subr.mxu0 0.0
    %249 = vmatpush1.msra.mxu0 %v182
    %250 = vmatprep.subr.mxu0 0.0
    %251 = vmatpush1.msra.mxu0 %v183
    %252 = vmatprep.subr.mxu0 0.0
    %253 = vmatpush1.msra.mxu0 %v184
    %254 = vmatprep.subr.mxu0 0.0
    %255 = vmatpush1.msra.mxu0 %v185
    %256 = vmatprep.subr.mxu0 0.0
    %257 = vmatpush1.msra.mxu0 %v186
    %258 = vmatprep.subr.mxu0 0.0
    %259 = vmatpush1.msra.mxu0 %v187
    %260 = vmatprep.subr.mxu0 0.0
    %261 = vmatpush1.msra.mxu0 %v188
    %262 = vmatprep.subr.mxu0 0.0
    %263 = vmatpush1.msra.mxu0 %v189
    %264 = vmatprep.subr.mxu0 0.0
    %265 = vmatpush1.msra.mxu0 %v190
    %266 = vmatprep.subr.mxu0 0.0
    %267 = vmatpush1.msra.mxu0 %v191
    %268 = vmatprep.subr.mxu0 0.0
    %269 = vmatpush1.msra.mxu0 %v192
    %270 = vmatprep.subr.mxu0 0.0
    %271 = vmatpush1.msra.mxu0 %v193
    %272 = vmatprep.subr.mxu0 0.0
    %273 = vmatpush1.msra.mxu0 %v194
    %274 = vmatprep.subr.mxu0 0.0
    %275 = vmatpush1.msra.mxu0 %v195
    %276 = vmatprep.subr.mxu0 0.0
    %277 = vmatpush1.msra.mxu0 %v196
    %278 = vmatprep.subr.mxu0 0.0
    %279 = vmatpush1.msra.mxu0 %v197
    %280 = vmatprep.subr.mxu0 0.0
    %281 = vmatpush1.msra.mxu0 %v198
    %282 = vmatprep.subr.mxu0 0.0
    %283 = vmatpush1.msra.mxu0 %v199
    %284 = vmatprep.subr.mxu0 0.0
    %285 = vmatpush1.msra.mxu0 %v200
    %286 = vmatprep.subr.mxu0 0.0
    %287 = vmatpush1.msra.mxu0 %v201
    %288 = vmatprep.subr.mxu0 0.0
    %289 = vmatpush1.msra.mxu0 %v202
    %290 = vmatprep.mubr.f32.mxu0 %v169
    %291 = vmatmul.mubr.f32.gmra.mrb[0].mxu0 %v168
    %v292 = vpop.f32.mrb[0].mxu0
    %v293 = vadd.f32 %v224, %v292
    %v294 = vpop.f32.mrb[0].mxu0
    %295 = vdwg.mxu0
    %296 = vmatprep.subr.mxu0 0.0
    %297 = vmatpush1.msra.mxu0 %v203
    %298 = vmatprep.subr.mxu0 0.0
    %299 = vmatpush1.msra.mxu0 %v204
    %300 = vmatprep.subr.mxu0 0.0
    %301 = vmatpush1.msra.mxu0 %v205
    %302 = vmatprep.subr.mxu0 0.0
    %303 = vmatpush1.msra.mxu0 %v206
    %304 = vmatprep.subr.mxu0 0.0
    %305 = vmatpush1.msra.mxu0 %v207
    %306 = vmatprep.subr.mxu0 0.0
    %307 = vmatpush1.msra.mxu0 %v208
    %308 = vmatprep.subr.mxu0 0.0
    %309 = vmatpush1.msra.mxu0 %v209
    %310 = vmatprep.subr.mxu0 0.0
    %311 = vmatpush1.msra.mxu0 %v210
    %312 = vmatprep.subr.mxu0 0.0
    %313 = vmatpush1.msra.mxu0 %v211
    %314 = vmatprep.subr.mxu0 0.0
    %315 = vmatpush1.msra.mxu0 %v212
    %316 = vmatprep.subr.mxu0 0.0
    %317 = vmatpush1.msra.mxu0 %v213
    %318 = vmatprep.subr.mxu0 0.0
    %319 = vmatpush1.msra.mxu0 %v214
    %320 = vmatprep.subr.mxu0 0.0
    %321 = vmatpush1.msra.mxu0 %v215
    %322 = vmatprep.subr.mxu0 0.0
    %323 = vmatpush1.msra.mxu0 %v216
    %324 = vmatprep.subr.mxu0 0.0
    %325 = vmatpush1.msra.mxu0 %v217
    %326 = vmatprep.subr.mxu0 0.0
    %327 = vmatpush1.msra.mxu0 %v218
    %328 = vmatprep.subr.mxu0 0.0
    %329 = vmatpush1.msra.mxu0 0.0
    %330 = vmatprep.subr.mxu0 0.0
    %331 = vmatpush1.msra.mxu0 0.0
    %332 = vmatprep.subr.mxu0 0.0
    %333 = vmatpush1.msra.mxu0 0.0
    %334 = vmatprep.subr.mxu0 0.0
    %335 = vmatpush1.msra.mxu0 0.0
    %336 = vmatprep.subr.mxu0 0.0
    %337 = vmatpush1.msra.mxu0 0.0
    %338 = vmatprep.subr.mxu0 0.0
    %339 = vmatpush1.msra.mxu0 0.0
    %340 = vmatprep.subr.mxu0 0.0
    %341 = vmatpush1.msra.mxu0 0.0
    %342 = vmatprep.subr.mxu0 0.0
    %343 = vmatpush1.msra.mxu0 0.0
    %344 = vmatprep.subr.mxu0 0.0
    %345 = vmatpush1.msra.mxu0 0.0
    %346 = vmatprep.subr.mxu0 0.0
    %347 = vmatpush1.msra.mxu0 0.0
    %348 = vmatprep.subr.mxu0 0.0
    %349 = vmatpush1.msra.mxu0 0.0
    %350 = vmatprep.subr.mxu0 0.0
    %351 = vmatpush1.msra.mxu0 0.0
    %352 = vmatprep.subr.mxu0 0.0
    %353 = vmatpush1.msra.mxu0 0.0
    %354 = vmatprep.subr.mxu0 0.0
    %355 = vmatpush1.msra.mxu0 0.0
    %356 = vmatprep.subr.mxu0 0.0
    %357 = vmatpush1.msra.mxu0 0.0
    %358 = vmatprep.subr.mxu0 0.0
    %359 = vmatpush1.msra.mxu0 0.0
    %360 = vmatprep.mubr.f32.mxu0 0.0
    %361 = vmatmul.mubr.f32.gmra.mrb[0].mxu0 %v170
    %v362 = vpop.f32.mrb[0].mxu0
    %v363 = vadd.f32 %v293, %v362
    %v364 = vpop.f32.mrb[0].mxu0
    %365 = vdwg.mxu0
    %v366 = vsub.f32 0.0, %v363
    %v367 = vmul.f32 %v366, 1.442695
    %v368 = vpow.pop %v367
    %v369 = vadd.f32 %v368, 1.0
    %v370 = vrcp.pop %v369
    %371 = vst [vmem:[#allocation5] sm:$0xff] %v370
    // Predicated region
    $region26: #{tpu_custom_call.1} parent=1 // pred_check
      _
    $region27: #{tpu_custom_call.1} parent=1 // pred_check_branch
      %373 = sbr.rel (0) target = $region29
    $region28: #{tpu_custom_call.1} parent=1 // pred_region
      %s375 = ssub.s32 128, 128
      %376 = vsyncadd [#allocation4], %s375
      %s378 = sshll.u32 [#allocation5], 4
      %s379 = int_to_ptr.vmem [resolvable:$true] %s378
      %381 = dma.vmem_to_hbm [thread:$0]  %s379, 128, %s5, [#allocation4]
    $region29: #{tpu_custom_call.1} parent=1 // pred_fallthru
      _
    // Predicated region
    $region30: #{tpu_custom_call.1} parent=1 // pred_check
      _
    $region31: #{tpu_custom_call.1} parent=1 // pred_check_branch
      %383 = sbr.rel (0) target = $region33
    $region32: #{tpu_custom_call.1} parent=1 // pred_region
      %384 = dma.done [#allocation4], 128
    $region33: #{tpu_custom_call.1} parent=1 // pred_fallthru
      _
    %385 = vsyncpa [#allocation3], 1
    %386 = vsyncpa [#allocation4], 1

</llo_original>
